<compile_context>
chip_gen: v7x
topology: tpu7x:2x2x1
jax: 0.10.0
libtpu: 0.0.40
codegen_flags: <defaults>
</compile_context>

<pallas_src>
import functools
import math

import jax
import jax.numpy as jnp
from jax import lax
from jax.experimental import pallas as pl
from jax.experimental.pallas import tpu as pltpu


def _round_up(x, m):
    return ((x + m - 1) // m) * m


def _mosaic_params(*tile_bytes, parallel_axes=1):
    # Explicit VMEM budget: double-buffered tiles + headroom, kept under v7x's 64 MiB.
    est = 2 * sum(int(b) for b in tile_bytes) + (4 << 20)
    limit = max(32 << 20, min(est, 56 << 20))
    return pltpu.CompilerParams(
        dimension_semantics=("parallel",) * parallel_axes,
        vmem_limit_bytes=int(limit),
    )


# ---------------------------------------------------------------------------
# Kernel 1: row-tiled linear (used for the fused QKV projection)
# ---------------------------------------------------------------------------
def _linear_kernel(x_ref, w_ref, b_ref, o_ref, *, compute_dtype):
    bias = b_ref[...].astype(jnp.float32)                      # hoisted param read
    y = jnp.dot(x_ref[...].astype(compute_dtype), w_ref[...],  # bf16 MXU, f32 acc
                preferred_element_type=jnp.float32)
    o_ref[...] = (y + bias).astype(o_ref.dtype)


def _pallas_linear(x2d, w, b, *, tm, compute_dtype):
    M, K = x2d.shape
    N = w.shape[1]
    tm = min(tm, _round_up(M, 8))
    m_pad = _round_up(M, tm)
    if m_pad != M:
        x2d = jnp.pad(x2d, ((0, m_pad - M), (0, 0)))
    w_c = w.astype(compute_dtype)
    itemsize = jnp.dtype(x2d.dtype).itemsize
    cbytes = jnp.dtype(compute_dtype).itemsize
    params = _mosaic_params(tm * K * itemsize, K * N * cbytes, tm * N * itemsize)

    out = pl.pallas_call(
        functools.partial(_linear_kernel, compute_dtype=compute_dtype),
        out_shape=jax.ShapeDtypeStruct((m_pad, N), x2d.dtype),
        grid_spec=pltpu.PrefetchScalarGridSpec(
            num_scalar_prefetch=0,
            grid=(m_pad // tm,),
            in_specs=[
                pl.BlockSpec((tm, K), lambda i: (i, 0)),   # activation tile
                pl.BlockSpec((K, N), lambda i: (0, 0)),    # resident weight (bf16)
                pl.BlockSpec((1, N), lambda i: (0, 0)),    # bias
            ],
            out_specs=pl.BlockSpec((tm, N), lambda i: (i, 0)),
        ),
        compiler_params=params,
    )(x2d, w_c, b.reshape(1, N))
    return out[:M]


# ---------------------------------------------------------------------------
# Kernel 2: attention core, one (batch, head) pair per grid step
# ---------------------------------------------------------------------------
def _attention_kernel(q_ref, k_ref, v_ref, mask_ref, o_ref, *, scale, compute_dtype):
    q = q_ref[0].astype(compute_dtype)          # (S, d)
    k = k_ref[0].astype(compute_dtype)          # (S, d)
    v = v_ref[0].astype(compute_dtype)          # (S, d)
    s = jnp.einsum("qd,kd->qk", q, k, preferred_element_type=jnp.float32) * scale
    s = s + mask_ref[0].astype(jnp.float32)     # (1, S) additive mask, broadcast over rows
    m = jnp.max(s, axis=-1, keepdims=True)
    p = jnp.exp(s - m)
    denom = jnp.sum(p, axis=-1, keepdims=True)
    p = p * pl.reciprocal(denom, approx=True)   # EUP slot, off the VALU critical path
    # TODO(synk): training-mode attention-probs dropout / head_mask (eval identity here).
    ctx = jnp.dot(p.astype(compute_dtype), v, preferred_element_type=jnp.float32)
    o_ref[0] = ctx.astype(o_ref.dtype)


# ---------------------------------------------------------------------------
# Kernel 3: BertSelfOutput — dense + (dropout) + residual add + LayerNorm
# ---------------------------------------------------------------------------
def _fused_output_kernel(x_ref, w_ref, b_ref, res_ref, g_ref, beta_ref, o_ref,
                         *, eps, compute_dtype):
    bias = b_ref[...].astype(jnp.float32)       # hoisted param reads
    gamma = g_ref[...].astype(jnp.float32)
    beta = beta_ref[...].astype(jnp.float32)
    y = jnp.dot(x_ref[...].astype(compute_dtype), w_ref[...],
                preferred_element_type=jnp.float32)
    y = y + bias
    # TODO(synk): training-mode hidden dropout via pltpu.prng_seed/prng_random_bits.
    y = y + res_ref[...].astype(jnp.float32)
    mean = jnp.mean(y, axis=-1, keepdims=True)
    c = y - mean
    var = jnp.mean(c * c, axis=-1, keepdims=True)
    o_ref[...] = (c * lax.rsqrt(var + eps) * gamma + beta).astype(o_ref.dtype)


def _pallas_dense_residual_layernorm(x2d, w, b, res2d, gamma, beta, *,
                                     eps, tm, compute_dtype):
    M, K = x2d.shape
    N = w.shape[1]
    tm = min(tm, _round_up(M, 8))
    m_pad = _round_up(M, tm)
    if m_pad != M:
        pad = ((0, m_pad - M), (0, 0))
        x2d = jnp.pad(x2d, pad)
        res2d = jnp.pad(res2d, pad)
    w_c = w.astype(compute_dtype)
    itemsize = jnp.dtype(x2d.dtype).itemsize
    cbytes = jnp.dtype(compute_dtype).itemsize
    params = _mosaic_params(tm * K * itemsize, K * N * cbytes,
                            tm * N * itemsize, tm * N * itemsize)

    out = pl.pallas_call(
        functools.partial(_fused_output_kernel, eps=eps, compute_dtype=compute_dtype),
        out_shape=jax.ShapeDtypeStruct((m_pad, N), x2d.dtype),
        grid_spec=pltpu.PrefetchScalarGridSpec(
            num_scalar_prefetch=0,
            grid=(m_pad // tm,),
            in_specs=[
                pl.BlockSpec((tm, K), lambda i: (i, 0)),   # context tile
                pl.BlockSpec((K, N), lambda i: (0, 0)),    # resident output weight (bf16)
                pl.BlockSpec((1, N), lambda i: (0, 0)),    # bias
                pl.BlockSpec((tm, N), lambda i: (i, 0)),   # residual tile
                pl.BlockSpec((1, N), lambda i: (0, 0)),    # LN gamma
                pl.BlockSpec((1, N), lambda i: (0, 0)),    # LN beta
            ],
            out_specs=pl.BlockSpec((tm, N), lambda i: (i, 0)),
        ),
        compiler_params=params,
    )(x2d, w_c, b.reshape(1, N), res2d, gamma.reshape(1, N), beta.reshape(1, N))
    return out[:M]


# ---------------------------------------------------------------------------
# Full BertAttention forward
# ---------------------------------------------------------------------------
def bert_attention(hidden_states, params, attention_mask=None, *, num_heads,
                   eps=1e-12, tm=256, compute_dtype=jnp.bfloat16):
    """hidden_states: [B, S, H].  Weights are stored [in, out] (torch weight .T)."""
    B, S, H = hidden_states.shape
    assert H % num_heads == 0
    d = H // num_heads
    M = B * S
    x2d = hidden_states.reshape(M, H)

    # --- fused QKV projection: one [H, 3H] matmul, row-tiled over M ---
    wqkv = jnp.concatenate([params["wq"], params["wk"], params["wv"]], axis=1)
    bqkv = jnp.concatenate([params["bq"], params["bk"], params["bv"]], axis=0)
    qkv = _pallas_linear(x2d, wqkv, bqkv, tm=tm, compute_dtype=compute_dtype)
    q, k, v = jnp.split(qkv, 3, axis=1)

    def to_heads(t):  # [M, H] -> [B*nH, S, d]
        return (t.reshape(B, S, num_heads, d)
                 .transpose(0, 2, 1, 3)
                 .reshape(B * num_heads, S, d))

    qh, kh, vh = to_heads(q), to_heads(k), to_heads(v)

    if attention_mask is None:
        mask3 = jnp.zeros((B, 1, S), hidden_states.dtype)
    else:
        mask3 = attention_mask.reshape(B, 1, S).astype(hidden_states.dtype)

    scale = 1.0 / math.sqrt(d)
    # TODO(synk): relative_key / relative_key_query position embeddings not implemented
    #             (default 'absolute' path only).
    ctx = pl.pallas_call(
        functools.partial(_attention_kernel, scale=scale, compute_dtype=compute_dtype),
        out_shape=jax.ShapeDtypeStruct((B * num_heads, S, d), hidden_states.dtype),
        grid_spec=pltpu.PrefetchScalarGridSpec(
            num_scalar_prefetch=0,
            grid=(B * num_heads,),
            in_specs=[
                pl.BlockSpec((1, S, d), lambda i: (i, 0, 0)),               # Q
                pl.BlockSpec((1, S, d), lambda i: (i, 0, 0)),               # K
                pl.BlockSpec((1, S, d), lambda i: (i, 0, 0)),               # V
                pl.BlockSpec((1, 1, S), lambda i: (i // num_heads, 0, 0)),  # additive mask
            ],
            out_specs=pl.BlockSpec((1, S, d), lambda i: (i, 0, 0)),
        ),
        compiler_params=_mosaic_params(4 * S * d * 4, S * 4),
    )(qh, kh, vh, mask3)

    # [B*nH, S, d] -> [M, H]
    ctx2d = (ctx.reshape(B, num_heads, S, d)
                .transpose(0, 2, 1, 3)
                .reshape(M, H))

    # --- BertSelfOutput: dense + residual + LayerNorm, fused ---
    out2d = _pallas_dense_residual_layernorm(
        ctx2d, params["wo"], params["bo"], x2d, params["gamma"], params["beta"],
        eps=eps, tm=tm, compute_dtype=compute_dtype)
    return out2d.reshape(B, S, H)


# ---------------------------------------------------------------------------
# Pure-JAX reference (f32)
# ---------------------------------------------------------------------------
def reference(hidden_states, params, attention_mask, num_heads, eps):
    B, S, H = hidden_states.shape
    d = H // num_heads

    def lin(x, w, b):
        return jnp.einsum("bsh,hk->bsk", x, w) + b

    def heads(t):
        return t.reshape(B, S, num_heads, d).transpose(0, 2, 1, 3)

    q = heads(lin(hidden_states, params["wq"], params["bq"]))
    k = heads(lin(hidden_states, params["wk"], params["bk"]))
    v = heads(lin(hidden_states, params["wv"], params["bv"]))
    s = jnp.einsum("bhqd,bhkd->bhqk", q, k) / math.sqrt(d)
    if attention_mask is not None:
        s = s + attention_mask.reshape(B, 1, 1, S)
    p = jax.nn.softmax(s, axis=-1)
    ctx = jnp.einsum("bhqk,bhkd->bhqd", p, v).transpose(0, 2, 1, 3).reshape(B, S, H)
    y = jnp.einsum("bsh,hk->bsk", ctx, params["wo"]) + params["bo"]
    y = y + hidden_states
    mean = jnp.mean(y, axis=-1, keepdims=True)
    var = jnp.mean((y - mean) ** 2, axis=-1, keepdims=True)
    return (y - mean) * lax.rsqrt(var + eps) * params["gamma"] + params["beta"]


if __name__ == "__main__":
    # small config: batch=2, seq=8, hidden=128, heads=4 (head_dim=32)
    B, S, H, NH = 2, 8, 128, 4
    eps = 1e-12

    key = jax.random.PRNGKey(0)
    ks = jax.random.split(key, 10)
    hidden = jax.random.normal(ks[0], (B, S, H), jnp.float32)
    wscale = 0.05
    params = dict(
        wq=jax.random.normal(ks[1], (H, H), jnp.float32) * wscale,
        bq=jax.random.normal(ks[2], (H,), jnp.float32) * 0.02,
        wk=jax.random.normal(ks[3], (H, H), jnp.float32) * wscale,
        bk=jax.random.normal(ks[4], (H,), jnp.float32) * 0.02,
        wv=jax.random.normal(ks[5], (H, H), jnp.float32) * wscale,
        bv=jax.random.normal(ks[6], (H,), jnp.float32) * 0.02,
        wo=jax.random.normal(ks[7], (H, H), jnp.float32) * wscale,
        bo=jax.random.normal(ks[8], (H,), jnp.float32) * 0.02,
        gamma=jnp.ones((H,), jnp.float32) + 0.1 * jax.random.normal(ks[9], (H,), jnp.float32),
        beta=jnp.zeros((H,), jnp.float32),
    )

    out = bert_attention(hidden, params, attention_mask=None, num_heads=NH, eps=eps)
    jax.block_until_ready(out)

    ref = reference(hidden, params, None, NH, eps)
    assert out.shape == (B, S, H)
    # bf16 MXU operands vs pure-f32 reference -> loose tolerance
    assert jnp.allclose(out, ref, atol=5e-2, rtol=5e-2), (
        f"mismatch vs reference: max abs diff {jnp.max(jnp.abs(out - ref))}")
    print("KERNEL_OK")
</pallas_src>

<mosaic_0001>
module attributes {stable_mosaic.version = 11 : i64} {
  func.func @_linear_kernel(%arg0: i32, %arg1: memref<16x128xf32, #tpu.memory_space<vmem>>, %arg2: memref<128x384xbf16, #tpu.memory_space<vmem>>, %arg3: memref<1x384xf32, #tpu.memory_space<vmem>>, %arg4: memref<16x384xf32, #tpu.memory_space<vmem>>) attributes {dimension_semantics = [#tpu.dimension_semantics<parallel>], iteration_bounds = array<i64: 1>, scalar_prefetch = 0 : i64, scratch_operands = 0 : i64, tpu.core_type = #tpu.core_type<tc>, window_params = [{transform_indices = @transform_0, window_bounds = array<i64: 16, 128>}, {pipeline_mode = #tpu.pipeline_mode<synchronous>, transform_indices = @transform_1, window_bounds = array<i64: 128, 384>}, {pipeline_mode = #tpu.pipeline_mode<synchronous>, transform_indices = @transform_2, window_bounds = array<i64: 1, 384>}, {transform_indices = @transform_3, window_bounds = array<i64: 16, 384>}]} {
    %c0 = arith.constant 0 : index
    %c0_0 = arith.constant 0 : index
    %0 = vector.load %arg3[%c0, %c0_0] : memref<1x384xf32, #tpu.memory_space<vmem>>, vector<1x384xf32>
    %c0_1 = arith.constant 0 : index
    %c0_2 = arith.constant 0 : index
    %1 = vector.load %arg1[%c0_1, %c0_2] : memref<16x128xf32, #tpu.memory_space<vmem>>, vector<16x128xf32>
    %2 = arith.truncf %1 : vector<16x128xf32> to vector<16x128xbf16>
    %c0_3 = arith.constant 0 : index
    %c0_4 = arith.constant 0 : index
    %3 = vector.load %arg2[%c0_3, %c0_4] : memref<128x384xbf16, #tpu.memory_space<vmem>>, vector<128x384xbf16>
    %cst = arith.constant dense<0.000000e+00> : vector<16x384xf32>
    %4 = tpu.matmul %2, %3, %cst {dimension_numbers = #tpu.dot_dimension_numbers<[1], [0], [0], [1], [0, 0, 1, 1], [], []>} : vector<16x128xbf16>, vector<128x384xbf16>, vector<16x384xf32> -> vector<16x384xf32>
    %5 = vector.broadcast %0 : vector<1x384xf32> to vector<16x384xf32>
    %6 = arith.addf %4, %5 : vector<16x384xf32>
    %c0_5 = arith.constant 0 : index
    %c0_6 = arith.constant 0 : index
    %7 = vector.load %arg4[%c0_5, %c0_6] : memref<16x384xf32, #tpu.memory_space<vmem>>, vector<16x384xf32>
    tpu.vector_store %arg4[%c0_5, %c0_6], %6 {strides = array<i32>} : memref<16x384xf32, #tpu.memory_space<vmem>>, vector<16x384xf32>,
    return
  }
  func.func @transform_0(%arg0: i32) -> (i32, i32) {
    %c0_i32 = arith.constant 0 : i32
    %c0_i32_0 = arith.constant 0 : i32
    return %arg0, %c0_i32 : i32, i32
  }
  func.func @transform_1(%arg0: i32) -> (i32, i32) {
    %c0_i32 = arith.constant 0 : i32
    %c0_i32_0 = arith.constant 0 : i32
    %c0_i32_1 = arith.constant 0 : i32
    return %c0_i32, %c0_i32_0 : i32, i32
  }
  func.func @transform_2(%arg0: i32) -> (i32, i32) {
    %c0_i32 = arith.constant 0 : i32
    %c0_i32_0 = arith.constant 0 : i32
    %c0_i32_1 = arith.constant 0 : i32
    return %c0_i32, %c0_i32_0 : i32, i32
  }
  func.func @transform_3(%arg0: i32) -> (i32, i32) {
    %c0_i32 = arith.constant 0 : i32
    %c0_i32_0 = arith.constant 0 : i32
    return %arg0, %c0_i32 : i32, i32
  }
}

</mosaic_0001>

<llo_original>
// kernel: tpu_custom_call.1
$region0: #{tpu_custom_call.1}
  #allocation0 [shape = 'u32[]', space=smem, size = 0x4, offset = 0x4, fixed_abs, tag = 'smem constant byte address 0x4 - core index']
  #allocation1 [shape = 'u32[144,128]{1,0:T(1,128)}', space=vmem, size = 0x12000, scoped, tag = 'internal scratch']
  %s0 = inlined_call_operand.hbm [shape: f32[16,128], index: 0, kind: input, shape index: {}]
  %s1 = inlined_call_operand.hbm [shape: bf16[128,384], index: 1, kind: input, shape index: {}]
  %s2 = inlined_call_operand.vmem [shape: f32[1,384], index: 2, kind: input, shape index: {}]
  %s3 = inlined_call_operand.hbm [shape: f32[16,384], index: 3, kind: output, shape index: {}]
  %s4 = sld [smem:[#allocation0]]
  $region30: #{tpu_custom_call.1} parent=0
    _
  %s6 = ssub.s32 1, %s4
  %s7 = scalar_select 0, %s6, %s4
  $region1: #{tpu_custom_call.1} parent=0
    #allocation2 [shape = 'u8[8192]{0}', space=vmem, size = 0x2000, scoped, tag = 'input window, operand 0, single buffered']
    #allocation3 [shape = 's32[1]{0}', space=sflag, size = 0x4, scoped, tag = 'scoped memory for tpu_custom_call.1']
    #allocation4 [shape = 's32[1]{0}', space=sflag, size = 0x4, scoped, tag = 'scoped memory for tpu_custom_call.1']
    #allocation5 [shape = 'u8[98304]{0}', space=vmem, size = 0x18000, scoped, tag = 'input window, operand 1, single buffered']
    #allocation6 [shape = 's32[1]{0}', space=sflag, size = 0x4, scoped, tag = 'scoped memory for tpu_custom_call.1']
    #allocation7 [shape = 'u8[24576]{0}', space=vmem, size = 0x6000, scoped, tag = 'output window, operand 0, single buffered']
    %8 = vsyncpa [#allocation3], 0
    %9 = vsyncpa [#allocation6], 0
    %10 = vsyncpa [#allocation4], 0
    // Predicated region
    $region2: #{tpu_custom_call.1} parent=1 // pred_check
      _
    $region3: #{tpu_custom_call.1} parent=1 // pred_check_branch
      %12 = sbr.rel (0) target = $region5
    $region4: #{tpu_custom_call.1} parent=1 // pred_region
      %s14 = ssub.s32 256, 256
      %15 = vsyncadd [#allocation3], %s14
      %s16 = sshll.u32 [#allocation2], 4
      %s17 = int_to_ptr.vmem [resolvable:$true] %s16
      %22 = dma.hbm_to_vmem [thread:$0]  %s0, 256, %s17, [#allocation3], 128, 128, 8
    $region5: #{tpu_custom_call.1} parent=1 // pred_fallthru
      _
    // Predicated region
    $region6: #{tpu_custom_call.1} parent=1 // pred_check
      _
    $region7: #{tpu_custom_call.1} parent=1 // pred_check_branch
      %24 = sbr.rel (0) target = $region9
    $region8: #{tpu_custom_call.1} parent=1 // pred_region
      %s26 = ssub.s32 3072, 3072
      %27 = vsyncadd [#allocation6], %s26
      %s28 = sshll.u32 [#allocation5], 4
      %s29 = int_to_ptr.vmem [resolvable:$true] %s28
      %34 = dma.hbm_to_vmem [thread:$0]  %s1, 3072, %s29, [#allocation6], 192, 192, 12
    $region9: #{tpu_custom_call.1} parent=1 // pred_fallthru
      _
    // Predicated region
    $region10: #{tpu_custom_call.1} parent=1 // pred_check
      _
    $region11: #{tpu_custom_call.1} parent=1 // pred_check_branch
      %36 = sbr.rel (0) target = $region13
    $region12: #{tpu_custom_call.1} parent=1 // pred_region
      _
    $region13: #{tpu_custom_call.1} parent=1 // pred_fallthru
      _
    // Predicated region
    $region14: #{tpu_custom_call.1} parent=1 // pred_check
      _
    $region15: #{tpu_custom_call.1} parent=1 // pred_check_branch
      %38 = sbr.rel (0) target = $region17
    $region16: #{tpu_custom_call.1} parent=1 // pred_region
      %39 = dma.done [#allocation3], 256
    $region17: #{tpu_custom_call.1} parent=1 // pred_fallthru
      _
    // Predicated region
    $region18: #{tpu_custom_call.1} parent=1 // pred_check
      _
    $region19: #{tpu_custom_call.1} parent=1 // pred_check_branch
      %41 = sbr.rel (0) target = $region21
    $region20: #{tpu_custom_call.1} parent=1 // pred_region
      %42 = dma.done [#allocation6], 3072
    $region21: #{tpu_custom_call.1} parent=1 // pred_fallthru
      _
    %v44 = vld [vmem:[%s2] sm:$0x7]
    %v45 = vld [vmem:[#allocation2] sm:$0xff]
    %v46 = vld [vmem:[#allocation2 + $0x8] sm:$0xff]
    %v47 = vpack.c.bf16 %v46, %v45
    %v48 = vld [vmem:[#allocation5] sm:$0xff]
    %v49 = vld [vmem:[#allocation5 + $0x8] sm:$0xf]
    %v50 = vld [vmem:[#allocation5 + $0xc] sm:$0xff]
    %v51 = vld [vmem:[#allocation5 + $0x14] sm:$0xf]
    %v52 = vld [vmem:[#allocation5 + $0x18] sm:$0xff]
    %v53 = vld [vmem:[#allocation5 + $0x20] sm:$0xf]
    %v54 = vld [vmem:[#allocation5 + $0x24] sm:$0xff]
    %v55 = vld [vmem:[#allocation5 + $0x2c] sm:$0xf]
    %v56 = vld [vmem:[#allocation5 + $0x30] sm:$0xff]
    %v57 = vld [vmem:[#allocation5 + $0x38] sm:$0xf]
    %v58 = vld [vmem:[#allocation5 + $0x3c] sm:$0xff]
    %v59 = vld [vmem:[#allocation5 + $0x44] sm:$0xf]
    %v60 = vld [vmem:[#allocation5 + $0x48] sm:$0xff]
    %v61 = vld [vmem:[#allocation5 + $0x50] sm:$0xf]
    %v62 = vld [vmem:[#allocation5 + $0x54] sm:$0xff]
    %v63 = vld [vmem:[#allocation5 + $0x5c] sm:$0xf]
    %v64 = vld [vmem:[#allocation5 + $0x60] sm:$0xff]
    %v65 = vld [vmem:[#allocation5 + $0x68] sm:$0xf]
    %v66 = vld [vmem:[#allocation5 + $0x6c] sm:$0xff]
    %v67 = vld [vmem:[#allocation5 + $0x74] sm:$0xf]
    %v68 = vld [vmem:[#allocation5 + $0x78] sm:$0xff]
    %v69 = vld [vmem:[#allocation5 + $0x80] sm:$0xf]
    %v70 = vld [vmem:[#allocation5 + $0x84] sm:$0xff]
    %v71 = vld [vmem:[#allocation5 + $0x8c] sm:$0xf]
    %v72 = vld [vmem:[#allocation5 + $0x90] sm:$0xff]
    %v73 = vld [vmem:[#allocation5 + $0x98] sm:$0xf]
    %v74 = vld [vmem:[#allocation5 + $0x9c] sm:$0xff]
    %v75 = vld [vmem:[#allocation5 + $0xa4] sm:$0xf]
    %v76 = vld [vmem:[#allocation5 + $0xa8] sm:$0xff]
    %v77 = vld [vmem:[#allocation5 + $0xb0] sm:$0xf]
    %v78 = vld [vmem:[#allocation5 + $0xb4] sm:$0xff]
    %v79 = vld [vmem:[#allocation5 + $0xbc] sm:$0xf]
    %v81 = vlaneseq
    %v82 = vshrl.u32 %v81, 7
    %v83 = vsub.s32 0, %v82
    %v84 = vrot.slane %v44, %v83
    %v85 = vlaneseq
    %v86 = vshrl.u32 %v85, 7
    %v87 = vsub.s32 1, %v86
    %v88 = vrot.slane %v44, %v87
    %v89 = vlaneseq
    %v90 = vshrl.u32 %v89, 7
    %v91 = vsub.s32 2, %v90
    %v92 = vrot.slane %v44, %v91
    %v128 = vunpack.c.l.b16 %v48
    %v129 = vunpack.c.h.b16 %v48
    %v130 = vunpack.c.l.b16 %v49
    %v131 = vunpack.c.l.b16 %v50
    %v132 = vunpack.c.h.b16 %v50
    %v133 = vunpack.c.l.b16 %v51
    %v134 = vunpack.c.l.b16 %v52
    %v135 = vunpack.c.h.b16 %v52
    %v136 = vunpack.c.l.b16 %v53
    %v137 = vunpack.c.l.b16 %v54
    %v138 = vunpack.c.h.b16 %v54
    %v139 = vunpack.c.l.b16 %v55
    %v140 = vunpack.c.l.b16 %v56
    %v141 = vunpack.c.h.b16 %v56
    %v142 = vunpack.c.l.b16 %v57
    %v143 = vunpack.c.l.b16 %v58
    %v144 = vunpack.c.h.b16 %v58
    %v145 = vunpack.c.l.b16 %v59
    %v146 = vunpack.c.l.b16 %v60
    %v147 = vunpack.c.h.b16 %v60
    %v148 = vunpack.c.l.b16 %v61
    %v149 = vunpack.c.l.b16 %v62
    %v150 = vunpack.c.h.b16 %v62
    %v151 = vunpack.c.l.b16 %v63
    %v152 = vunpack.c.l.b16 %v64
    %v153 = vunpack.c.h.b16 %v64
    %v154 = vunpack.c.l.b16 %v65
    %v155 = vunpack.c.l.b16 %v66
    %v156 = vunpack.c.h.b16 %v66
    %v157 = vunpack.c.l.b16 %v67
    %v158 = vunpack.c.l.b16 %v68
    %v159 = vunpack.c.h.b16 %v68
    %v160 = vunpack.c.l.b16 %v69
    %v161 = vunpack.c.l.b16 %v70
    %v162 = vunpack.c.h.b16 %v70
    %v163 = vunpack.c.l.b16 %v71
    %v164 = vunpack.c.l.b16 %v72
    %v165 = vunpack.c.h.b16 %v72
    %v166 = vunpack.c.l.b16 %v73
    %v167 = vunpack.c.l.b16 %v74
    %v168 = vunpack.c.h.b16 %v74
    %v169 = vunpack.c.l.b16 %v75
    %v170 = vunpack.c.l.b16 %v76
    %v171 = vunpack.c.h.b16 %v76
    %v172 = vunpack.c.l.b16 %v77
    %v173 = vunpack.c.l.b16 %v78
    %v174 = vunpack.c.h.b16 %v78
    %v175 = vunpack.c.l.b16 %v79
    %v176 = vpack.c.b16 %v131, %v128
    %v177 = vpack.c.b16 %v132, %v129
    %v178 = vpack.c.b16 %v133, %v130
    %v179 = vpack.c.b16 %v137, %v134
    %v180 = vpack.c.b16 %v138, %v135
    %v181 = vpack.c.b16 %v139, %v136
    %v182 = vpack.c.b16 %v143, %v140
    %v183 = vpack.c.b16 %v144, %v141
    %v184 = vpack.c.b16 %v145, %v142
    %v185 = vpack.c.b16 %v149, %v146
    %v186 = vpack.c.b16 %v150, %v147
    %v187 = vpack.c.b16 %v151, %v148
    %v188 = vpack.c.b16 %v155, %v152
    %v189 = vpack.c.b16 %v156, %v153
    %v190 = vpack.c.b16 %v157, %v154
    %v191 = vpack.c.b16 %v161, %v158
    %v192 = vpack.c.b16 %v162, %v159
    %v193 = vpack.c.b16 %v163, %v160
    %v194 = vpack.c.b16 %v167, %v164
    %v195 = vpack.c.b16 %v168, %v165
    %v196 = vpack.c.b16 %v169, %v166
    %v197 = vpack.c.b16 %v173, %v170
    %v198 = vpack.c.b16 %v174, %v171
    %v199 = vpack.c.b16 %v175, %v172
    %224 = vmatprep.subr.bf16.mxu0 %v177
    %225 = vmatpush1.bf16.msra.mxu0 %v176
    %226 = vmatprep.subr.bf16.mxu0 %v180
    %227 = vmatpush1.bf16.msra.mxu0 %v179
    %228 = vmatprep.subr.bf16.mxu0 %v183
    %229 = vmatpush1.bf16.msra.mxu0 %v182
    %230 = vmatprep.subr.bf16.mxu0 %v186
    %231 = vmatpush1.bf16.msra.mxu0 %v185
    %232 = vmatprep.subr.bf16.mxu0 %v189
    %233 = vmatpush1.bf16.msra.mxu0 %v188
    %234 = vmatprep.subr.bf16.mxu0 %v192
    %235 = vmatpush1.bf16.msra.mxu0 %v191
    %236 = vmatprep.subr.bf16.mxu0 %v195
    %237 = vmatpush1.bf16.msra.mxu0 %v194
    %238 = vmatprep.subr.bf16.mxu0 %v198
    %239 = vmatpush1.bf16.msra.mxu0 %v197
    %240 = vmatprep.subr.bf16.mxu0 0
    %241 = vmatpush1.bf16.msra.mxu0 0
    %242 = vmatprep.subr.bf16.mxu0 0
    %243 = vmatpush1.bf16.msra.mxu0 0
    %244 = vmatprep.subr.bf16.mxu0 0
    %245 = vmatpush1.bf16.msra.mxu0 0
    %246 = vmatprep.subr.bf16.mxu0 0
    %247 = vmatpush1.bf16.msra.mxu0 0
    %248 = vmatprep.subr.bf16.mxu0 0
    %249 = vmatpush1.bf16.msra.mxu0 0
    %250 = vmatprep.subr.bf16.mxu0 0
    %251 = vmatpush1.bf16.msra.mxu0 0
    %252 = vmatprep.subr.bf16.mxu0 0
    %253 = vmatpush1.bf16.msra.mxu0 0
    %254 = vmatprep.subr.bf16.mxu0 0
    %255 = vmatpush1.bf16.msra.mxu0 0
    %256 = vmatprep.mubr.bf16.mxu0 0
    %257 = vmatmul.mubr.bf16.gmra.mrb[0].mxu0 %v47
    %v258 = vpop.f32.mrb[0].mxu0
    %v259 = vadd.f32 %v84, %v258
    %v260 = vpop.f32.mrb[0].mxu0
    %v261 = vadd.f32 %v88, %v260
    %v262 = vpop.f32.mrb[0].mxu0
    %v263 = vadd.f32 %v84, %v262
    %v264 = vpop.f32.mrb[0].mxu0
    %v265 = vadd.f32 %v88, %v264
    %266 = vdwg.mxu0
    %267 = vmatprep.subr.bf16.mxu0 0
    %268 = vmatpush1.bf16.msra.mxu0 %v178
    %269 = vmatprep.subr.bf16.mxu0 0
    %270 = vmatpush1.bf16.msra.mxu0 %v181
    %271 = vmatprep.subr.bf16.mxu0 0
    %272 = vmatpush1.bf16.msra.mxu0 %v184
    %273 = vmatprep.subr.bf16.mxu0 0
    %274 = vmatpush1.bf16.msra.mxu0 %v187
    %275 = vmatprep.subr.bf16.mxu0 0
    %276 = vmatpush1.bf16.msra.mxu0 %v190
    %277 = vmatprep.subr.bf16.mxu0 0
    %278 = vmatpush1.bf16.msra.mxu0 %v193
    %279 = vmatprep.subr.bf16.mxu0 0
    %280 = vmatpush1.bf16.msra.mxu0 %v196
    %281 = vmatprep.subr.bf16.mxu0 0
    %282 = vmatpush1.bf16.msra.mxu0 %v199
    %283 = vmatprep.subr.bf16.mxu0 0
    %284 = vmatpush1.bf16.msra.mxu0 0
    %285 = vmatprep.subr.bf16.mxu0 0
    %286 = vmatpush1.bf16.msra.mxu0 0
    %287 = vmatprep.subr.bf16.mxu0 0
    %288 = vmatpush1.bf16.msra.mxu0 0
    %289 = vmatprep.subr.bf16.mxu0 0
    %290 = vmatpush1.bf16.msra.mxu0 0
    %291 = vmatprep.subr.bf16.mxu0 0
    %292 = vmatpush1.bf16.msra.mxu0 0
    %293 = vmatprep.subr.bf16.mxu0 0
    %294 = vmatpush1.bf16.msra.mxu0 0
    %295 = vmatprep.subr.bf16.mxu0 0
    %296 = vmatpush1.bf16.msra.mxu0 0
    %297 = vmatprep.subr.bf16.mxu0 0
    %298 = vmatpush1.bf16.msra.mxu0 0
    %299 = vmatprep.mubr.bf16.mxu0 0
    %300 = vmatmul.mubr.bf16.gmra.mrb[0].mxu0 %v47
    %v301 = vpop.f32.mrb[0].mxu0
    %v302 = vadd.f32 %v92, %v301
    %v303 = vpop.f32.mrb[0].mxu0
    %v304 = vpop.f32.mrb[0].mxu0
    %v305 = vadd.f32 %v92, %v304
    %v306 = vpop.f32.mrb[0].mxu0
    %307 = vdwg.mxu0
    %308 = vst [vmem:[#allocation7] sm:$0xff] %v259
    %309 = vst [vmem:[#allocation7 + $0x8] sm:$0xff] %v261
    %310 = vst [vmem:[#allocation7 + $0x10] sm:$0xff] %v302
    %311 = vst [vmem:[#allocation7 + $0x18] sm:$0xff] %v263
    %312 = vst [vmem:[#allocation7 + $0x20] sm:$0xff] %v265
    %313 = vst [vmem:[#allocation7 + $0x28] sm:$0xff] %v305
    // Predicated region
    $region22: #{tpu_custom_call.1} parent=1 // pred_check
      _
    $region23: #{tpu_custom_call.1} parent=1 // pred_check_branch
      %315 = sbr.rel (0) target = $region25
    $region24: #{tpu_custom_call.1} parent=1 // pred_region
      %s317 = ssub.s32 768, 768
      %318 = vsyncadd [#allocation4], %s317
      %s319 = sshll.u32 [#allocation7], 4
      %s320 = int_to_ptr.vmem [resolvable:$true] %s319
      %325 = dma.vmem_to_hbm [thread:$0]  %s320, 768, %s3, [#allocation4], 384, 384, 24
    $region25: #{tpu_custom_call.1} parent=1 // pred_fallthru
      _
    // Predicated region
    $region26: #{tpu_custom_call.1} parent=1 // pred_check
      _
    $region27: #{tpu_custom_call.1} parent=1 // pred_check_branch
      %327 = sbr.rel (0) target = $region29
    $region28: #{tpu_custom_call.1} parent=1 // pred_region
      %328 = dma.done [#allocation4], 768
    $region29: #{tpu_custom_call.1} parent=1 // pred_fallthru
      _
    %329 = vsyncpa [#allocation3], 1
    %330 = vsyncpa [#allocation6], 1
    %331 = vsyncpa [#allocation4], 1

</llo_original>
